<compile_context>
chip_gen: v7x
topology: tpu7x:2x2x1
jax: 0.10.0
libtpu: 0.0.40
codegen_flags: <defaults>
</compile_context>

<pallas_src>
import functools

import jax
import jax.numpy as jnp
from jax.experimental import pallas as pl
from jax.experimental.pallas import tpu as pltpu


# --------------------------------------------------------------------------------------------
# Small host-side helpers
# --------------------------------------------------------------------------------------------
def _round_up(n, m):
    return ((n + m - 1) // m) * m


def _largest_divisor(n, cap, step):
    """Largest multiple of `step` that divides n and is <= cap; falls back to n itself."""
    c = (min(cap, n) // step) * step
    while c >= step:
        if n % c == 0:
            return c
        c -= step
    return n


def _vmem_capacity_bytes():
    """Per-core VMEM capacity; conservative 64 MiB fallback fits every generation."""
    cap = None
    try:
        cap = getattr(pltpu.get_tpu_info(), "vmem_capacity_bytes", None)
    except Exception:
        cap = None
    if not cap or cap <= 0:
        cap = 64 * 1024 * 1024
    return int(cap)


# --------------------------------------------------------------------------------------------
# Stage 1: fused QKV projection   y = x @ [Wq^T*s | Wk^T | Wv^T] + [bq*s | bk | bv]
# --------------------------------------------------------------------------------------------
def _qkv_proj_kernel(x_ref, w_ref, b_ref, q_ref, k_ref, v_ref):
    f = q_ref.shape[-1]
    # One MXU pass over x with a lane-dense 3F-wide N dimension; one f32 bias broadcast.
    qkv = jnp.dot(x_ref[...], w_ref[...], preferred_element_type=jnp.float32) + b_ref[...]
    q_ref[...] = qkv[:, :f].astype(q_ref.dtype)
    k_ref[...] = qkv[:, f:2 * f].astype(k_ref.dtype)
    v_ref[...] = qkv[:, 2 * f:].astype(v_ref.dtype)


# --------------------------------------------------------------------------------------------
# Stage 2: flash attention with online softmax (KV reduction axis is the last grid axis)
# --------------------------------------------------------------------------------------------
def _flash_attn_kernel(q_ref, k_ref, v_ref, o_ref, m_sc, l_sc, acc_sc, *, kv_valid, kv_tile):
    ki = pl.program_id(2)

    @pl.when(ki == 0)
    def _init():
        m_sc[...] = jnp.full_like(m_sc, -jnp.inf)
        l_sc[...] = jnp.zeros_like(l_sc)
        acc_sc[...] = jnp.zeros_like(acc_sc)

    q = q_ref[0]   # (tq, F) -- 1/sqrt(F) already folded into the Q projection
    k = k_ref[0]   # (tk, F)
    v = v_ref[0]   # (tk, F)

    # scores = q @ k^T by contracting the minor dims directly on the MXU (no XLU transpose).
    s = jax.lax.dot_general(
        q, k,
        dimension_numbers=(((1,), (1,)), ((), ())),
        preferred_element_type=jnp.float32,
    )  # (tq, tk) f32

    if kv_valid is not None:
        # Static path only when S was padded: mask padded KV columns before the softmax.
        col = jax.lax.broadcasted_iota(jnp.int32, s.shape, 1) + ki * kv_tile
        s = jnp.where(col < kv_valid, s, -1e30)

    m_prev = m_sc[...]
    m_new = jnp.maximum(m_prev, jnp.max(s, axis=-1, keepdims=True))
    alpha = jnp.exp(m_prev - m_new)
    p = jnp.exp(s - m_new)
    l_sc[...] = alpha * l_sc[...] + jnp.sum(p, axis=-1, keepdims=True)
    acc_sc[...] = alpha * acc_sc[...] + jnp.dot(
        p.astype(v.dtype), v, preferred_element_type=jnp.float32)
    m_sc[...] = m_new

    @pl.when(ki == pl.num_programs(2) - 1)
    def _finalize():
        inv_l = pl.reciprocal(l_sc[...], approx=True)   # EUP slot, essentially free
        o_ref[0] = (acc_sc[...] * inv_l).astype(o_ref.dtype)


# --------------------------------------------------------------------------------------------
# Wrapper
# --------------------------------------------------------------------------------------------
def self_attention(x, wq, bq, wk, bk, wv, bv, *, compute_dtype=jnp.bfloat16):
    """x: (B, S, F). Weights are PyTorch nn.Linear layout (out_features, in_features)."""
    B, S, F = x.shape
    out_dtype = x.dtype
    cdt = jnp.dtype(compute_dtype)
    dsz = cdt.itemsize
    osz = jnp.dtype(out_dtype).itemsize
    scale = 1.0 / (F ** 0.5)

    cap = _vmem_capacity_bytes()
    vmem_limit = min(int(cap * 0.85), 128 * 1024 * 1024)
    tile_budget = int(cap * 0.70)          # what we plan block bytes against (leaves headroom)

    # ---- host-side prep: pad S to a sublane multiple, fuse + pre-transpose weights -----------
    S_pad = _round_up(S, 8)
    x_p = x if S_pad == S else jnp.pad(x, ((0, 0), (0, S_pad - S), (0, 0)))
    M = B * S_pad
    x2d = x_p.reshape(M, F).astype(cdt)

    wqkv = jnp.concatenate([wq.T * scale, wk.T, wv.T], axis=1).astype(cdt)               # (F, 3F)
    bqkv = jnp.concatenate([bq * scale, bk, bv]).reshape(1, 3 * F).astype(jnp.float32)   # (1, 3F)

    # ---- Stage 1: fused QKV projection, weights VMEM-resident, M tiled "parallel" ------------
    w_bytes = 2 * F * 3 * F * dsz + 2 * 3 * F * 4          # fused weight + bias (2 pipeline bufs)
    row_bytes = 2 * F * dsz + 3 * 2 * F * dsz              # x block + 3 output blocks, 2 bufs each
    tm_cap = max(8, (tile_budget - w_bytes) // max(row_bytes, 1))
    tm_cap = min(tm_cap, 1024, M)
    if M >= 16:
        tm_cap = min(tm_cap, M // 2)                        # >= 2 parallel steps (v7x megacore)
    tm = _largest_divisor(M, max(8, tm_cap), 8)

    q2, k2, v2 = pl.pallas_call(
        _qkv_proj_kernel,
        out_shape=tuple(jax.ShapeDtypeStruct((M, F), cdt) for _ in range(3)),
        grid_spec=pltpu.PrefetchScalarGridSpec(
            num_scalar_prefetch=0,
            grid=(M // tm,),
            in_specs=[
                pl.BlockSpec((tm, F), lambda i: (i, 0)),
                pl.BlockSpec((F, 3 * F), lambda i: (0, 0)),    # resident fused weight
                pl.BlockSpec((1, 3 * F), lambda i: (0, 0)),    # resident fused bias (f32)
            ],
            out_specs=[
                pl.BlockSpec((tm, F), lambda i: (i, 0)),
                pl.BlockSpec((tm, F), lambda i: (i, 0)),
                pl.BlockSpec((tm, F), lambda i: (i, 0)),
            ],
        ),
        compiler_params=pltpu.CompilerParams(
            dimension_semantics=("parallel",),
            vmem_limit_bytes=vmem_limit,
        ),
    )(x2d, wqkv, bqkv)

    q3 = q2.reshape(B, S_pad, F)   # free reshapes
    k3 = k2.reshape(B, S_pad, F)
    v3 = v2.reshape(B, S_pad, F)

    # ---- Stage 2: flash attention, grid (batch, q-tile, kv-tile), KV axis last ---------------
    def fits2(tq_, tk_):
        b = (2 * tq_ * F * dsz               # Q block, double-buffered
             + 4 * tk_ * F * dsz             # K + V blocks, double-buffered
             + 2 * tq_ * F * osz             # output block
             + tq_ * F * 4 + 2 * tq_ * 4     # f32 accumulator + m + l scratch
             + 2 * tq_ * tk_ * 4)            # scores / probs live values
        return b <= tile_budget

    kv_bytes_per_batch = 2 * S_pad * F * dsz
    tk_cands = []
    if kv_bytes_per_batch <= 4 * 1024 * 1024:
        tk_cands.append(S_pad)               # collapse the KV axis: K/V DMA'd exactly once
    c = (min(S_pad, 512) // 8) * 8
    while c >= 8:
        if S_pad % c == 0 and c not in tk_cands:
            tk_cands.append(c)
        c -= 8
    if not tk_cands:
        tk_cands.append(S_pad)

    tq = tk = None
    for tkc in tk_cands:
        c = (min(S_pad, 1024) // 8) * 8
        while c >= 8:
            if S_pad % c == 0 and fits2(c, tkc):
                tq, tk = c, tkc
                break
            c -= 8
        if tq is not None:
            break
    if tq is None:
        # TODO(synk): extreme F -- even minimal seq tiles exceed the budget; needs feature tiling.
        tq, tk = min(8, S_pad), tk_cands[-1]
    if B == 1 and tq == S_pad and S_pad >= 16:
        tq = _largest_divisor(S_pad, S_pad // 2, 8)     # give v7x's 2nd TensorCore some work

    kernel = functools.partial(
        _flash_attn_kernel,
        kv_valid=(S if S_pad != S else None),
        kv_tile=tk,
    )

    out = pl.pallas_call(
        kernel,
        out_shape=jax.ShapeDtypeStruct((B, S_pad, F), out_dtype),
        grid_spec=pltpu.PrefetchScalarGridSpec(
            num_scalar_prefetch=0,
            grid=(B, S_pad // tq, S_pad // tk),
            in_specs=[
                pl.BlockSpec((1, tq, F), lambda b, qi, ki: (b, qi, 0)),   # Q tile
                pl.BlockSpec((1, tk, F), lambda b, qi, ki: (b, ki, 0)),   # K tile
                pl.BlockSpec((1, tk, F), lambda b, qi, ki: (b, ki, 0)),   # V tile
            ],
            out_specs=pl.BlockSpec((1, tq, F), lambda b, qi, ki: (b, qi, 0)),
            scratch_shapes=[
                pltpu.VMEM((tq, 1), jnp.float32),    # running max
                pltpu.VMEM((tq, 1), jnp.float32),    # running denom
                pltpu.VMEM((tq, F), jnp.float32),    # output accumulator
            ],
        ),
        compiler_params=pltpu.CompilerParams(
            dimension_semantics=("parallel", "parallel", "arbitrary"),
            vmem_limit_bytes=vmem_limit,
        ),
    )(q3, k3, v3)

    return out if S_pad == S else out[:, :S, :]


# --------------------------------------------------------------------------------------------
# Pure-JAX reference (matches the PyTorch module semantics)
# --------------------------------------------------------------------------------------------
def _reference(x, wq, bq, wk, bk, wv, bv):
    q = jnp.einsum("bsf,of->bso", x, wq) + bq
    k = jnp.einsum("bsf,of->bso", x, wk) + bk
    v = jnp.einsum("bsf,of->bso", x, wv) + bv
    scores = jnp.einsum("bqf,bkf->bqk", q, k) / (x.shape[-1] ** 0.5)
    w = jax.nn.softmax(scores, axis=-1)
    return jnp.einsum("bqk,bkf->bqf", w, v)


if __name__ == "__main__":
    def make_inputs(key, B, S, F):
        kx, kwq, kbq, kwk, kbk, kwv, kbv = jax.random.split(key, 7)
        bound = 1.0 / (F ** 0.5)
        uni = lambda k, shape: jax.random.uniform(k, shape, minval=-bound, maxval=bound,
                                                  dtype=jnp.float32)
        x = jax.random.normal(kx, (B, S, F), dtype=jnp.float32)
        return (x, uni(kwq, (F, F)), uni(kbq, (F,)), uni(kwk, (F, F)), uni(kbk, (F,)),
                uni(kwv, (F, F)), uni(kbv, (F,)))

    # Case 1: aligned small shape (B=2, S=8, F=32), default bf16 MXU path.
    args = make_inputs(jax.random.PRNGKey(0), 2, 8, 32)
    ref = _reference(*args)

    out = self_attention(*args)                       # default compute_dtype = bf16
    jax.block_until_ready(out)
    assert out.shape == ref.shape
    err_bf16 = float(jnp.max(jnp.abs(out.astype(jnp.float32) - ref)))
    assert jnp.allclose(out.astype(jnp.float32), ref, atol=3e-2, rtol=3e-2), (
        f"bf16 mismatch, max|err|={err_bf16}")

    # Explicit f32 path (tighter tolerance; approx-reciprocal normalization accounted for).
    out_f32 = self_attention(*args, compute_dtype=jnp.float32)
    jax.block_until_ready(out_f32)
    err_f32 = float(jnp.max(jnp.abs(out_f32 - ref)))
    assert jnp.allclose(out_f32, ref, atol=2e-3, rtol=2e-3), f"f32 mismatch, max|err|={err_f32}"

    # Case 2: non-multiple-of-8 sequence (S=12) exercises padding + KV column masking.
    args2 = make_inputs(jax.random.PRNGKey(1), 2, 12, 32)
    ref2 = _reference(*args2)
    out2 = self_attention(*args2, compute_dtype=jnp.float32)
    jax.block_until_ready(out2)
    assert out2.shape == ref2.shape
    err_pad = float(jnp.max(jnp.abs(out2 - ref2)))
    assert jnp.allclose(out2, ref2, atol=2e-3, rtol=2e-3), f"padded mismatch, max|err|={err_pad}"

    print("KERNEL_OK")
</pallas_src>

<mosaic_0001>
module attributes {stable_mosaic.version = 11 : i64} {
  func.func @_qkv_proj_kernel(%arg0: i32, %arg1: memref<8x32xbf16, #tpu.memory_space<vmem>>, %arg2: memref<32x96xbf16, #tpu.memory_space<vmem>>, %arg3: memref<1x96xf32, #tpu.memory_space<vmem>>, %arg4: memref<8x32xbf16, #tpu.memory_space<vmem>>, %arg5: memref<8x32xbf16, #tpu.memory_space<vmem>>, %arg6: memref<8x32xbf16, #tpu.memory_space<vmem>>) attributes {dimension_semantics = [#tpu.dimension_semantics<parallel>], iteration_bounds = array<i64: 2>, scalar_prefetch = 0 : i64, scratch_operands = 0 : i64, tpu.core_type = #tpu.core_type<tc>, window_params = [{transform_indices = @transform_0, window_bounds = array<i64: 8, 32>}, {pipeline_mode = #tpu.pipeline_mode<synchronous>, transform_indices = @transform_1, window_bounds = array<i64: 32, 96>}, {pipeline_mode = #tpu.pipeline_mode<synchronous>, transform_indices = @transform_2, window_bounds = array<i64: 1, 96>}, {transform_indices = @transform_3, window_bounds = array<i64: 8, 32>}, {transform_indices = @transform_4, window_bounds = array<i64: 8, 32>}, {transform_indices = @transform_5, window_bounds = array<i64: 8, 32>}]} {
    %c0 = arith.constant 0 : index
    %c0_0 = arith.constant 0 : index
    %0 = vector.load %arg1[%c0, %c0_0] : memref<8x32xbf16, #tpu.memory_space<vmem>>, vector<8x32xbf16>
    %c0_1 = arith.constant 0 : index
    %c0_2 = arith.constant 0 : index
    %1 = vector.load %arg2[%c0_1, %c0_2] : memref<32x96xbf16, #tpu.memory_space<vmem>>, vector<32x96xbf16>
    %cst = arith.constant dense<0.000000e+00> : vector<8x96xf32>
    %2 = tpu.matmul %0, %1, %cst {dimension_numbers = #tpu.dot_dimension_numbers<[1], [0], [0], [1], [0, 0, 1, 1], [], []>} : vector<8x32xbf16>, vector<32x96xbf16>, vector<8x96xf32> -> vector<8x96xf32>
    %c0_3 = arith.constant 0 : index
    %c0_4 = arith.constant 0 : index
    %3 = vector.load %arg3[%c0_3, %c0_4] : memref<1x96xf32, #tpu.memory_space<vmem>>, vector<1x96xf32>
    %4 = vector.broadcast %3 : vector<1x96xf32> to vector<8x96xf32>
    %5 = arith.addf %2, %4 : vector<8x96xf32>
    %6 = vector.extract_strided_slice %5 {offsets = [0, 0], sizes = [8, 32], strides = [1, 1]} : vector<8x96xf32> to vector<8x32xf32>
    %7 = arith.truncf %6 : vector<8x32xf32> to vector<8x32xbf16>
    %c0_5 = arith.constant 0 : index
    %c0_6 = arith.constant 0 : index
    %8 = vector.load %arg4[%c0_5, %c0_6] : memref<8x32xbf16, #tpu.memory_space<vmem>>, vector<8x32xbf16>
    tpu.vector_store %arg4[%c0_5, %c0_6], %7 {strides = array<i32>} : memref<8x32xbf16, #tpu.memory_space<vmem>>, vector<8x32xbf16>,
    %9 = vector.extract_strided_slice %5 {offsets = [0, 32], sizes = [8, 32], strides = [1, 1]} : vector<8x96xf32> to vector<8x32xf32>
    %10 = arith.truncf %9 : vector<8x32xf32> to vector<8x32xbf16>
    %c0_7 = arith.constant 0 : index
    %c0_8 = arith.constant 0 : index
    %11 = vector.load %arg5[%c0_7, %c0_8] : memref<8x32xbf16, #tpu.memory_space<vmem>>, vector<8x32xbf16>
    tpu.vector_store %arg5[%c0_7, %c0_8], %10 {strides = array<i32>} : memref<8x32xbf16, #tpu.memory_space<vmem>>, vector<8x32xbf16>,
    %12 = vector.extract_strided_slice %5 {offsets = [0, 64], sizes = [8, 32], strides = [1, 1]} : vector<8x96xf32> to vector<8x32xf32>
    %13 = arith.truncf %12 : vector<8x32xf32> to vector<8x32xbf16>
    %c0_9 = arith.constant 0 : index
    %c0_10 = arith.constant 0 : index
    %14 = vector.load %arg6[%c0_9, %c0_10] : memref<8x32xbf16, #tpu.memory_space<vmem>>, vector<8x32xbf16>
    tpu.vector_store %arg6[%c0_9, %c0_10], %13 {strides = array<i32>} : memref<8x32xbf16, #tpu.memory_space<vmem>>, vector<8x32xbf16>,
    return
  }
  func.func @transform_0(%arg0: i32) -> (i32, i32) {
    %c0_i32 = arith.constant 0 : i32
    %c0_i32_0 = arith.constant 0 : i32
    return %arg0, %c0_i32 : i32, i32
  }
  func.func @transform_1(%arg0: i32) -> (i32, i32) {
    %c0_i32 = arith.constant 0 : i32
    %c0_i32_0 = arith.constant 0 : i32
    %c0_i32_1 = arith.constant 0 : i32
    return %c0_i32, %c0_i32_0 : i32, i32
  }
  func.func @transform_2(%arg0: i32) -> (i32, i32) {
    %c0_i32 = arith.constant 0 : i32
    %c0_i32_0 = arith.constant 0 : i32
    %c0_i32_1 = arith.constant 0 : i32
    return %c0_i32, %c0_i32_0 : i32, i32
  }
  func.func @transform_3(%arg0: i32) -> (i32, i32) {
    %c0_i32 = arith.constant 0 : i32
    %c0_i32_0 = arith.constant 0 : i32
    return %arg0, %c0_i32 : i32, i32
  }
  func.func @transform_4(%arg0: i32) -> (i32, i32) {
    %c0_i32 = arith.constant 0 : i32
    %c0_i32_0 = arith.constant 0 : i32
    return %arg0, %c0_i32 : i32, i32
  }
  func.func @transform_5(%arg0: i32) -> (i32, i32) {
    %c0_i32 = arith.constant 0 : i32
    %c0_i32_0 = arith.constant 0 : i32
    return %arg0, %c0_i32 : i32, i32
  }
}

</mosaic_0001>

<llo_original>
// kernel: tpu_custom_call.1
$region0: #{tpu_custom_call.1}
  #allocation0 [shape = 'u32[]', space=smem, size = 0x4, offset = 0x4, fixed_abs, tag = 'smem constant byte address 0x4 - core index']
  #allocation1 [shape = 'u32[144,128]{1,0:T(1,128)}', space=vmem, size = 0x12000, scoped, tag = 'internal scratch']
  %s0 = inlined_call_operand.hbm [shape: bf16[16,32], index: 0, kind: input, shape index: {}]
  %s1 = inlined_call_operand.hbm [shape: bf16[32,96], index: 1, kind: input, shape index: {}]
  %s2 = inlined_call_operand.vmem [shape: f32[1,96], index: 2, kind: input, shape index: {}]
  %s3 = inlined_call_operand.hbm [shape: bf16[16,32], index: 3, kind: output, shape index: {0}]
  %s4 = inlined_call_operand.hbm [shape: bf16[16,32], index: 4, kind: output, shape index: {1}]
  %s5 = inlined_call_operand.hbm [shape: bf16[16,32], index: 5, kind: output, shape index: {2}]
  %6 = xla_tuple %s3, %s4, %s5
  %s7 = sld [smem:[#allocation0]]
  $region69: #{tpu_custom_call.1} parent=0
    _
  %s9 = ssub.s32 1, %s7
  %s10 = scalar_select 0, %s9, %s7
  $region1: #{tpu_custom_call.1} parent=0
    #allocation2 [shape = 'u8[4096]{0}', space=vmem, size = 0x1000, scoped, tag = 'input window, operand 0']
    #allocation3 [shape = 's32[2]{0}', space=sflag, size = 0x8, scoped, tag = 'scoped memory for tpu_custom_call.1']
    #allocation4 [shape = 's32[2]{0}', space=sflag, size = 0x8, scoped, tag = 'scoped memory for tpu_custom_call.1']
    #allocation5 [shape = 'u8[8192]{0}', space=vmem, size = 0x2000, scoped, tag = 'input window, operand 1, single buffered']
    #allocation6 [shape = 's32[1]{0}', space=sflag, size = 0x4, scoped, tag = 'scoped memory for tpu_custom_call.1']
    #allocation7 [shape = 'u8[4096]{0}', space=vmem, size = 0x1000, scoped, tag = 'output window, operand 0']
    #allocation8 [shape = 'u8[4096]{0}', space=vmem, size = 0x1000, scoped, tag = 'output window, operand 1']
    #allocation9 [shape = 's32[2]{0}', space=sflag, size = 0x8, scoped, tag = 'scoped memory for tpu_custom_call.1']
    #allocation10 [shape = 'u8[4096]{0}', space=vmem, size = 0x1000, scoped, tag = 'output window, operand 2']
    %11 = vsyncpa [#allocation3], 0
    %s12 = scalar_lea.sflag [#allocation3], 1
    %13 = vsyncpa %s12, 0
    %14 = vsyncpa [#allocation6], 0
    %15 = vsyncpa [#allocation4], 0
    %s16 = scalar_lea.sflag [#allocation4], 1
    %17 = vsyncpa %s16, 0
    %18 = vsyncpa [#allocation9], 0
    %s19 = scalar_lea.sflag [#allocation9], 1
    %20 = vsyncpa %s19, 0
    loop: start=0, step=1, limit=4
    $region2: #{tpu_custom_call.1} parent=1 // loop_pre_header
      _
    $region3: #{tpu_custom_call.1} parent=1 // loop_header
      %s22 = sphi 0, %s26
      %p23 = scmp.ge.s32.totalorder %s22, 4
      %s32 = sphi 0, %s34
      %s35 = sphi 0, %s32
      %s36 = sphi 0, %s35
      %s52 = sphi 0, %s36
      %s56 = sphi 0, %s56
      %s58 = sphi 0, %s56
      %s59 = sphi 0, %s58
      %s73 = sphi 0, %s59
      %s77 = sphi 0, %s77
      %s79 = sphi 0, %s77
      %s80 = sphi 0, %s79
      %s94 = sphi 0, %s80
      %s100 = sphi 0, %s102
      %s103 = sphi 0, %s100
      %s104 = sphi 0, %s103
      %s120 = sphi 0, %s104
      %s126 = sphi 0, %s128
      %s129 = sphi 0, %s126
      %s130 = sphi 0, %s129
      %s146 = sphi 0, %s130
      %s152 = sphi 0, %s154
      %s155 = sphi 0, %s152
      %s156 = sphi 0, %s155
      %s172 = sphi 0, %s156
    $region4: #{tpu_custom_call.1} parent=1 // loop_header_branch
      %25 = sbr.rel (%p23) target = $region8
    $region5: #{tpu_custom_call.1} parent=1 // loop_body
      %s27 = ssub.s32 %s22, 1
      %s28 = ssub.s32 %s22, 2
      %s29 = sadd.s32 %s22, 1
      %s30 = ssub.s32 %s22, %s29
      %p31 = scmp.eq.s32.totalorder %s30, 0
      %s33 = sadd.s32 %s32, 1
      %s34 = scalar_select %p31, %s32, %s33
      %p37 = pneg %p31
      %p38 = scmp.eq.s32.totalorder %s22, 1
      %p39 = por %p37, %p38
      %p40 = scmp.ne.s32.totalorder %s32, %s35
      %p41 = scmp.eq.s32.totalorder %s22, 0
      %p42 = por %p40, %p41
      %p43 = scmp.ne.s32.totalorder %s32, %s35
      %p44 = scmp.eq.s32.totalorder %s27, 1
      %p45 = por %p43, %p44
      %p46 = scmp.ne.s32.totalorder %s35, %s36
      %p47 = scmp.eq.s32.totalorder %s27, 0
      %p48 = por %p46, %p47
      %p49 = scmp.ne.s32.totalorder %s35, %s36
      %p50 = scmp.eq.s32.totalorder %s28, 1
      %p51 = por %p49, %p50
      %p53 = scmp.ne.s32.totalorder %s36, %s52
      %p54 = scmp.eq.s32.totalorder %s28, 0
      %p55 = por %p53, %p54
      %s57 = sadd.s32 %s56, 1
      %p60 = scmp.eq.s32.totalorder %s22, 1
      %p61 = scmp.ne.s32.totalorder %s56, %s58
      %p62 = scmp.eq.s32.totalorder %s22, 0
      %p63 = por %p61, %p62
      %p64 = scmp.ne.s32.totalorder %s56, %s58
      %p65 = scmp.eq.s32.totalorder %s27, 1
      %p66 = por %p64, %p65
      %p67 = scmp.ne.s32.totalorder %s58, %s59
      %p68 = scmp.eq.s32.totalorder %s27, 0
      %p69 = por %p67, %p68
      %p70 = scmp.ne.s32.totalorder %s58, %s59
      %p71 = scmp.eq.s32.totalorder %s28, 1
      %p72 = por %p70, %p71
      %p74 = scmp.ne.s32.totalorder %s59, %s73
      %p75 = scmp.eq.s32.totalorder %s28, 0
      %p76 = por %p74, %p75
      %s78 = sadd.s32 %s77, 1
      %p81 = scmp.eq.s32.totalorder %s22, 1
      %p82 = scmp.ne.s32.totalorder %s77, %s79
      %p83 = scmp.eq.s32.totalorder %s22, 0
      %p84 = por %p82, %p83
      %p85 = scmp.ne.s32.totalorder %s77, %s79
      %p86 = scmp.eq.s32.totalorder %s27, 1
      %p87 = por %p85, %p86
      %p88 = scmp.ne.s32.totalorder %s79, %s80
      %p89 = scmp.eq.s32.totalorder %s27, 0
      %p90 = por %p88, %p89
      %p91 = scmp.ne.s32.totalorder %s79, %s80
      %p92 = scmp.eq.s32.totalorder %s28, 1
      %p93 = por %p91, %p92
      %p95 = scmp.ne.s32.totalorder %s80, %s94
      %p96 = scmp.eq.s32.totalorder %s28, 0
      %p97 = por %p95, %p96
      %s98 = ssub.s32 %s22, %s29
      %p99 = scmp.eq.s32.totalorder %s98, 0
      %s101 = sadd.s32 %s100, 1
      %s102 = scalar_select %p99, %s100, %s101
      %p105 = pneg %p99
      %p106 = scmp.eq.s32.totalorder %s22, 1
      %p107 = por %p105, %p106
      %p108 = scmp.ne.s32.totalorder %s100, %s103
      %p109 = scmp.eq.s32.totalorder %s22, 0
      %p110 = por %p108, %p109
      %p111 = scmp.ne.s32.totalorder %s100, %s103
      %p112 = scmp.eq.s32.totalorder %s27, 1
      %p113 = por %p111, %p112
      %p114 = scmp.ne.s32.totalorder %s103, %s104
      %p115 = scmp.eq.s32.totalorder %s27, 0
      %p116 = por %p114, %p115
      %p117 = scmp.ne.s32.totalorder %s103, %s104
      %p118 = scmp.eq.s32.totalorder %s28, 1
      %p119 = por %p117, %p118
      %p121 = scmp.ne.s32.totalorder %s104, %s120
      %p122 = scmp.eq.s32.totalorder %s28, 0
      %p123 = por %p121, %p122
      %s124 = ssub.s32 %s22, %s29
      %p125 = scmp.eq.s32.totalorder %s124, 0
      %s127 = sadd.s32 %s126, 1
      %s128 = scalar_select %p125, %s126, %s127
      %p131 = pneg %p125
      %p132 = scmp.eq.s32.totalorder %s22, 1
      %p133 = por %p131, %p132
      %p134 = scmp.ne.s32.totalorder %s126, %s129
      %p135 = scmp.eq.s32.totalorder %s22, 0
      %p136 = por %p134, %p135
      %p137 = scmp.ne.s32.totalorder %s126, %s129
      %p138 = scmp.eq.s32.totalorder %s27, 1
      %p139 = por %p137, %p138
      %p140 = scmp.ne.s32.totalorder %s129, %s130
      %p141 = scmp.eq.s32.totalorder %s27, 0
      %p142 = por %p140, %p141
      %p143 = scmp.ne.s32.totalorder %s129, %s130
      %p144 = scmp.eq.s32.totalorder %s28, 1
      %p145 = por %p143, %p144
      %p147 = scmp.ne.s32.totalorder %s130, %s146
      %p148 = scmp.eq.s32.totalorder %s28, 0
      %p149 = por %p147, %p148
      %s150 = ssub.s32 %s22, %s29
      %p151 = scmp.eq.s32.totalorder %s150, 0
      %s153 = sadd.s32 %s152, 1
      %s154 = scalar_select %p151, %s152, %s153
      %p157 = pneg %p151
      %p158 = scmp.eq.s32.totalorder %s22, 1
      %p159 = por %p157, %p158
      %p160 = scmp.ne.s32.totalorder %s152, %s155
      %p161 = scmp.eq.s32.totalorder %s22, 0
      %p162 = por %p160, %p161
      %p163 = scmp.ne.s32.totalorder %s152, %s155
      %p164 = scmp.eq.s32.totalorder %s27, 1
      %p165 = por %p163, %p164
      %p166 = scmp.ne.s32.totalorder %s155, %s156
      %p167 = scmp.eq.s32.totalorder %s27, 0
      %p168 = por %p166, %p167
      %p169 = scmp.ne.s32.totalorder %s155, %s156
      %p170 = scmp.eq.s32.totalorder %s28, 1
      %p171 = por %p169, %p170
      %p173 = scmp.ne.s32.totalorder %s156, %s172
      %p174 = scmp.eq.s32.totalorder %s28, 0
      %p175 = por %p173, %p174
      %p176 = scmp.le.s32.totalorder 1, %s22
      %p177 = scmp.lt.s32.totalorder %s22, 3
      %p178 = pnand %p176, %p177
      %p179 = pneg %p178
      // Predicated region
      $region9: #{tpu_custom_call.1} parent=5 // pred_check
        _
      $region10: #{tpu_custom_call.1} parent=5 // pred_check_branch
        %181 = sbr.rel (%p178) target = $region12
      $region11: #{tpu_custom_call.1} parent=5 // pred_region
        %s182 = ssub.s32 %s22, 1
        // Predicated region
        $region13: #{tpu_custom_call.1} parent=11 // pred_check
          %p183 = pneg %p69
        $region14: #{tpu_custom_call.1} parent=11 // pred_check_branch
          %185 = sbr.rel (%p183) target = $region16
        $region15: #{tpu_custom_call.1} parent=11 // pred_region
          %s187 = ssub.s32 256, 256
          %188 = vsyncadd [#allocation6], %s187
          %s189 = sshll.u32 [#allocation5], 4
          %s190 = int_to_ptr.vmem [resolvable:$true] %s189
          %195 = dma.hbm_to_vmem [thread:$0]  %s1, 256, %s190, [#allocation6], 64, 64, 4
        $region16: #{tpu_custom_call.1} parent=11 // pred_fallthru
          _
        // Predicated region
        $region17: #{tpu_custom_call.1} parent=11 // pred_check
          %p196 = pneg %p90
        $region18: #{tpu_custom_call.1} parent=11 // pred_check_branch
          %198 = sbr.rel (%p196) target = $region20
        $region19: #{tpu_custom_call.1} parent=11 // pred_region
          _
        $region20: #{tpu_custom_call.1} parent=11 // pred_fallthru
          _
      $region12: #{tpu_custom_call.1} parent=5 // pred_fallthru
        _
      %p199 = scmp.lt.s32.totalorder %s22, 2
      // Predicated region
      $region21: #{tpu_custom_call.1} parent=5 // pred_check
        %p200 = pneg %p199
      $region22: #{tpu_custom_call.1} parent=5 // pred_check_branch
        %202 = sbr.rel (%p200) target = $region24
      $region23: #{tpu_custom_call.1} parent=5 // pred_region
        // Predicated region
        $region25: #{tpu_custom_call.1} parent=23 // pred_check
          %p203 = pneg %p42
        $region26: #{tpu_custom_call.1} parent=23 // pred_check_branch
          %205 = sbr.rel (%p203) target = $region28
        $region27: #{tpu_custom_call.1} parent=23 // pred_region
          %s206 = sand.u32 %s32, 1
          %s207 = scalar_lea.sflag [#allocation3], %s206
          %s208 = sand.u32 %s32, 1
          %s209 = smul.addr %s208, 4
          %s210 = scalar_lea.vmem [#allocation2], %s209
          %s212 = ssub.s32 64, 64
          %213 = vsyncadd %s207, %s212
          %s214 = smul.addr %s22, 64
          %s215 = scalar_lea.hbm %s0, %s214
          %s217 = sshll.u32 %s210, 4
          %s218 = int_to_ptr.vmem [resolvable:$true] %s217
          %220 = dma.hbm_to_vmem [thread:$0]  %s215, 64, %s218, %s207
        $region28: #{tpu_custom_call.1} parent=23 // pred_fallthru
          _
      $region24: #{tpu_custom_call.1} parent=5 // pred_fallthru
        _
      %p221 = scmp.le.s32.totalorder 1, %s22
      %p222 = scmp.lt.s32.totalorder %s22, 3
      %p223 = pnand %p221, %p222
      %p224 = pneg %p223
      // Predicated region
      $region29: #{tpu_custom_call.1} parent=5 // pred_check
        _
      $region30: #{tpu_custom_call.1} parent=5 // pred_check_branch
        %226 = sbr.rel (%p223) target = $region32
      $region31: #{tpu_custom_call.1} parent=5 // pred_region
        %s227 = ssub.s32 %s22, 1
        %s228 = sand.u32 %s35, 1
        %s229 = scalar_lea.sflag [#allocation3], %s228
        %s230 = sand.u32 %s35, 1
        %s231 = smul.addr %s230, 4
        %s232 = scalar_lea.vmem [#allocation2], %s231
        // Predicated region
        $region33: #{tpu_custom_call.1} parent=31 // pred_check
          %p233 = pneg %p48
        $region34: #{tpu_custom_call.1} parent=31 // pred_check_branch
          %235 = sbr.rel (%p233) target = $region36
        $region35: #{tpu_custom_call.1} parent=31 // pred_region
          %236 = dma.done %s229, 64
        $region36: #{tpu_custom_call.1} parent=31 // pred_fallthru
          _
        // Predicated region
        $region37: #{tpu_custom_call.1} parent=31 // pred_check
          %p237 = pneg %p69
        $region38: #{tpu_custom_call.1} parent=31 // pred_check_branch
          %239 = sbr.rel (%p237) target = $region40
        $region39: #{tpu_custom_call.1} parent=31 // pred_region
          %240 = dma.done [#allocation6], 256
        $region40: #{tpu_custom_call.1} parent=31 // pred_fallthru
          _
        %s241 = sand.u32 %s35, 1
        %s242 = scalar_lea.sflag [#allocation3], %s241
        %s243 = sand.u32 %s35, 1
        %s244 = smul.addr %s243, 4
        %s245 = scalar_lea.vmem [#allocation2], %s244
        %p246 = pneg %p48
        %p247 = pneg %p45
        %p248 = pneg %p69
        %p249 = pneg %p66
        %p250 = pneg %p90
        %p251 = pneg %p87
        %p252 = pneg %p116
        %p253 = pneg %p113
        %s254 = sand.u32 %s103, 1
        %s255 = scalar_lea.sflag [#allocation4], %s254
        %s256 = sand.u32 %s103, 1
        %s257 = smul.addr %s256, 4
        %s258 = scalar_lea.vmem [#allocation7], %s257
        %p259 = pneg %p142
        %p260 = pneg %p139
        %s261 = sand.u32 %s27, 1
        %s262 = scalar_lea.sflag [#allocation9], %s261
        %s263 = sand.u32 %s129, 1
        %s264 = smul.addr %s263, 4
        %s265 = scalar_lea.vmem [#allocation8], %s264
        %p266 = pneg %p168
        %p267 = pneg %p165
        %s268 = sand.u32 %s27, 1
        %s269 = scalar_lea.sflag [#allocation9], %s268
        %s270 = sand.u32 %s155, 1
        %s271 = smul.addr %s270, 4
        %s272 = scalar_lea.vmem [#allocation10], %s271
        %v274 = vld [vmem:[%s232] sm:$0xf]
        %v275 = vld [vmem:[#allocation5] sm:$0xf]
        %v276 = vld [vmem:[#allocation5 + $0x4] sm:$0xf]
        %v277 = vld [vmem:[#allocation5 + $0x8] sm:$0xf]
        %v278 = vld [vmem:[#allocation5 + $0xc] sm:$0xf]
        %v279 = vld [vmem:[%s2] sm:$0x1]
        %v281 = vlaneseq
        %v282 = vshrl.u32 %v281, 7
        %v283 = vsub.s32 0, %v282
        %v284 = vrot.slane %v279, %v283
        %v290 = vunpack.c.l.b16 %v275
        %v291 = vunpack.c.l.b16 %v276
        %v292 = vunpack.c.l.b16 %v277
        %v293 = vunpack.c.l.b16 %v278
        %v294 = vpack.c.b16 %v291, %v290
        %v295 = vpack.c.b16 %v293, %v292
        %vm298 = vcmask 261120
        %v300 = vsel %vm298, %v274, 0
        %302 = vmatprep.subr.bf16.mxu0 0
        %303 = vmatpush1.bf16.msra.mxu0 %v294
        %304 = vmatprep.subr.bf16.mxu0 0
        %305 = vmatpush1.bf16.msra.mxu0 %v295
        %306 = vmatprep.subr.bf16.mxu0 0
        %307 = vmatpush1.bf16.msra.mxu0 0
        %308 = vmatprep.subr.bf16.mxu0 0
        %309 = vmatpush1.bf16.msra.mxu0 0
        %310 = vmatprep.subr.bf16.mxu0 0
        %311 = vmatpush1.bf16.msra.mxu0 0
        %312 = vmatprep.subr.bf16.mxu0 0
        %313 = vmatpush1.bf16.msra.mxu0 0
        %314 = vmatprep.subr.bf16.mxu0 0
        %315 = vmatpush1.bf16.msra.mxu0 0
        %316 = vmatprep.subr.bf16.mxu0 0
        %317 = vmatpush1.bf16.msra.mxu0 0
        %318 = vmatprep.subr.bf16.mxu0 0
        %319 = vmatpush1.bf16.msra.mxu0 0
        %320 = vmatprep.subr.bf16.mxu0 0
        %321 = vmatpush1.bf16.msra.mxu0 0
        %322 = vmatprep.subr.bf16.mxu0 0
        %323 = vmatpush1.bf16.msra.mxu0 0
        %324 = vmatprep.subr.bf16.mxu0 0
        %325 = vmatpush1.bf16.msra.mxu0 0
        %326 = vmatprep.subr.bf16.mxu0 0
        %327 = vmatpush1.bf16.msra.mxu0 0
        %328 = vmatprep.subr.bf16.mxu0 0
        %329 = vmatpush1.bf16.msra.mxu0 0
        %330 = vmatprep.subr.bf16.mxu0 0
        %331 = vmatpush1.bf16.msra.mxu0 0
        %332 = vmatprep.subr.bf16.mxu0 0
        %333 = vmatpush1.bf16.msra.mxu0 0
        %334 = vmatprep.mubr.bf16.mxu0 0
        %335 = vmatmul.mubr.bf16.gmra.mrb[0].mxu0 %v300
        %v336 = vpop.f32.mrb[0].mxu0
        %v337 = vadd.f32 %v284, %v336
        %v338 = vpop.f32.mrb[0].mxu0
        %v339 = vpop.f32.mrb[0].mxu0
        %v340 = vpop.f32.mrb[0].mxu0
        %341 = vdwg.mxu0
        %v342 = vpack.c.bf16 %v337, %v337
        %vm343 = vcmask 257024
        %344 = vst.msk [vmem:[%s258] sm:$0xf] %vm343, %v342
        %v346 = vunpack.c.l.b16 %v342
        %v347 = vpack.c.b16 %v346, %v346
        %348 = vrot.lane.b32.xlu0 %v347, 96
        %v349 = vpop.permute.xlu0 %348
        %351 = vst.msk [vmem:[%s265] sm:$0xf] %vm343, %v349
        %352 = vrot.lane.b32.xlu0 %v347, 64
        %v353 = vpop.permute.xlu0 %352
        %355 = vst.msk [vmem:[%s272] sm:$0xf] %vm343, %v353
        %s356 = sand.u32 %s103, 1
        %s357 = scalar_lea.sflag [#allocation4], %s356
        %s358 = sand.u32 %s103, 1
        %s359 = smul.addr %s358, 4
        %s360 = scalar_lea.vmem [#allocation7], %s359
        %s361 = sand.u32 %s27, 1
        %s362 = scalar_lea.sflag [#allocation9], %s361
        %s363 = sand.u32 %s129, 1
        %s364 = smul.addr %s363, 4
        %s365 = scalar_lea.vmem [#allocation8], %s364
        %s366 = sand.u32 %s27, 1
        %s367 = scalar_lea.sflag [#allocation9], %s366
        %s368 = sand.u32 %s155, 1
        %s369 = smul.addr %s368, 4
        %s370 = scalar_lea.vmem [#allocation10], %s369
        // Predicated region
        $region41: #{tpu_custom_call.1} parent=31 // pred_check
          %p371 = pneg %p113
        $region42: #{tpu_custom_call.1} parent=31 // pred_check_branch
          %373 = sbr.rel (%p371) target = $region44
        $region43: #{tpu_custom_call.1} parent=31 // pred_region
          %s375 = ssub.s32 64, 64
          %376 = vsyncadd %s357, %s375
          %s377 = smul.addr %s27, 64
          %s378 = scalar_lea.hbm %s3, %s377
          %s380 = sshll.u32 %s360, 4
          %s381 = int_to_ptr.vmem [resolvable:$true] %s380
          %383 = dma.vmem_to_hbm [thread:$0]  %s381, 64, %s378, %s357
        $region44: #{tpu_custom_call.1} parent=31 // pred_fallthru
          _
        // Predicated region
        $region45: #{tpu_custom_call.1} parent=31 // pred_check
          %p384 = pneg %p139
        $region46: #{tpu_custom_call.1} parent=31 // pred_check_branch
          %386 = sbr.rel (%p384) target = $region48
        $region47: #{tpu_custom_call.1} parent=31 // pred_region
          %s388 = ssub.s32 64, 64
          %389 = vsyncadd %s362, %s388
          %s390 = smul.addr %s27, 64
          %s391 = scalar_lea.hbm %s4, %s390
          %s393 = sshll.u32 %s365, 4
          %s394 = int_to_ptr.vmem [resolvable:$true] %s393
          %396 = dma.vmem_to_hbm [thread:$0]  %s394, 64, %s391, %s362
        $region48: #{tpu_custom_call.1} parent=31 // pred_fallthru
          _
        // Predicated region
        $region49: #{tpu_custom_call.1} parent=31 // pred_check
          %p397 = pneg %p165
        $region50: #{tpu_custom_call.1} parent=31 // pred_check_branch
          %399 = sbr.rel (%p397) target = $region52
        $region51: #{tpu_custom_call.1} parent=31 // pred_region
          %s401 = ssub.s32 64, 64
          %402 = vsyncadd %s367, %s401
          %s403 = smul.addr %s27, 64
          %s404 = scalar_lea.hbm %s5, %s403
          %s406 = sshll.u32 %s370, 4
          %s407 = int_to_ptr.vmem [resolvable:$true] %s406
          %409 = dma.vmem_to_hbm [thread:$0]  %s407, 64, %s404, %s367
        $region52: #{tpu_custom_call.1} parent=31 // pred_fallthru
          _
      $region32: #{tpu_custom_call.1} parent=5 // pred_fallthru
        _
      %p410 = scmp.le.s32.totalorder 2, %s22
      // Predicated region
      $region53: #{tpu_custom_call.1} parent=5 // pred_check
        %p411 = pneg %p410
      $region54: #{tpu_custom_call.1} parent=5 // pred_check_branch
        %413 = sbr.rel (%p411) target = $region56
      $region55: #{tpu_custom_call.1} parent=5 // pred_region
        %s414 = ssub.s32 %s22, 2
        // Predicated region
        $region57: #{tpu_custom_call.1} parent=55 // pred_check
          %p415 = pneg %p119
        $region58: #{tpu_custom_call.1} parent=55 // pred_check_branch
          %417 = sbr.rel (%p415) target = $region60
        $region59: #{tpu_custom_call.1} parent=55 // pred_region
          %s418 = sand.u32 %s104, 1
          %s419 = scalar_lea.sflag [#allocation4], %s418
          %s420 = sand.u32 %s104, 1
          %s421 = smul.addr %s420, 4
          %s422 = scalar_lea.vmem [#allocation7], %s421
          %423 = dma.done %s419, 64
        $region60: #{tpu_custom_call.1} parent=55 // pred_fallthru
          _
        // Predicated region
        $region61: #{tpu_custom_call.1} parent=55 // pred_check
          %p424 = pneg %p145
        $region62: #{tpu_custom_call.1} parent=55 // pred_check_branch
          %426 = sbr.rel (%p424) target = $region64
        $region63: #{tpu_custom_call.1} parent=55 // pred_region
          %s427 = sand.u32 %s28, 1
          %s428 = scalar_lea.sflag [#allocation9], %s427
          %s429 = sand.u32 %s130, 1
          %s430 = smul.addr %s429, 4
          %s431 = scalar_lea.vmem [#allocation8], %s430
          %432 = dma.done %s428, 64
        $region64: #{tpu_custom_call.1} parent=55 // pred_fallthru
          _
        // Predicated region
        $region65: #{tpu_custom_call.1} parent=55 // pred_check
          %p433 = pneg %p171
        $region66: #{tpu_custom_call.1} parent=55 // pred_check_branch
          %435 = sbr.rel (%p433) target = $region68
        $region67: #{tpu_custom_call.1} parent=55 // pred_region
          %s436 = sand.u32 %s28, 1
          %s437 = scalar_lea.sflag [#allocation9], %s436
          %s438 = sand.u32 %s156, 1
          %s439 = smul.addr %s438, 4
          %s440 = scalar_lea.vmem [#allocation10], %s439
          %441 = dma.done %s437, 64
        $region68: #{tpu_custom_call.1} parent=55 // pred_fallthru
          _
      $region56: #{tpu_custom_call.1} parent=5 // pred_fallthru
        _
    $region6: #{tpu_custom_call.1} parent=1 // loop_footer
      %s26 = sadd.s32 1, %s22
    $region7: #{tpu_custom_call.1} parent=1 // loop_footer_branch
      %21 = sbr.rel target = $region3
    $region8: #{tpu_custom_call.1} parent=1 // loop_exit
      _
    %442 = vsyncpa [#allocation3], 1
    %s443 = scalar_lea.sflag [#allocation3], 1
    %444 = vsyncpa %s443, 1
    %445 = vsyncpa [#allocation6], 1
    %446 = vsyncpa [#allocation4], 1
    %s447 = scalar_lea.sflag [#allocation4], 1
    %448 = vsyncpa %s447, 1
    %449 = vsyncpa [#allocation9], 1
    %s450 = scalar_lea.sflag [#allocation9], 1
    %451 = vsyncpa %s450, 1

</llo_original>
